<compile_context>
chip_gen: v7x
topology: tpu7x:2x2x1
jax: 0.10.0
libtpu: 0.0.40
codegen_flags: <defaults>
</compile_context>

<pallas_src>
import jax
import jax.numpy as jnp
import numpy as np
from jax import lax
from jax.experimental import pallas as pl
from jax.experimental.pallas import tpu as pltpu

D = 128          # embedding dimension (Marine default dimension=128)
B = 8            # batch size
NODE_COUNT = 32  # synthetic Analyzer.nodeCount
RELA_COUNT = 4   # synthetic Analyzer.relaCount
NUM_WE = 3       # len(set(id2class.values()))


def _softplus(x):
    # numerically stable softplus (matches torch.nn.functional.softplus)
    return jnp.maximum(x, 0.0) + jnp.log1p(jnp.exp(-jnp.abs(x)))


def marine_kernel(batch_ref, node_ref, rela_ref, link_ref, sdiff_ref, we_ref,
                  out_ref):
    batch = batch_ref[...]            # (B, 5) int32
    node_tbl = node_ref[...]          # (NODE_COUNT, D) f32
    rela_tbl = rela_ref[...]          # (RELA_COUNT, D) f32
    link_tbl = link_ref[...]          # (RELA_COUNT, D) f32

    b = batch.shape[0]
    n_nodes = node_tbl.shape[0]
    n_rela = rela_tbl.shape[0]
    num_we, num_pairs, _ = sdiff_ref.shape

    # ---- all four node-embedding gathers in ONE MXU matmul -----------------
    node_iota = lax.broadcasted_iota(jnp.int32, (b, n_nodes), 1)
    sels = [(node_iota == batch[:, c:c + 1]).astype(jnp.float32)
            for c in (1, 2, 3, 4)]                       # 4 x (B, NODE_COUNT)
    node_sel = jnp.concatenate(sels, axis=0)             # (4B, NODE_COUNT)
    gathered = jnp.dot(node_sel, node_tbl,
                       preferred_element_type=jnp.float32)  # (4B, D)
    pos_i = gathered[0 * b:1 * b]
    pos_j = gathered[1 * b:2 * b]
    neg_i = gathered[2 * b:3 * b]
    neg_j = gathered[3 * b:4 * b]

    # ---- rela / link gathers share one selection matrix --------------------
    rela_iota = lax.broadcasted_iota(jnp.int32, (b, n_rela), 1)
    sel_k = (rela_iota == batch[:, 0:1]).astype(jnp.float32)     # (B, RELA)
    rela_k = jnp.dot(sel_k, rela_tbl, preferred_element_type=jnp.float32)
    link_k = jnp.dot(sel_k, link_tbl, preferred_element_type=jnp.float32)

    # relaError + linkError combined -> single lane reduction over D.
    err = ((neg_j - neg_i - pos_j + pos_i) * rela_k
           + (neg_i * neg_j - pos_i * pos_j) * link_k)            # (B, D)
    margin = jnp.sum(err, axis=1, keepdims=True)                  # (B, 1)
    loss = jnp.sum(_softplus(margin))                             # scalar

    # ---- cluster-centre pairwise term, one MXU contraction ----------------
    #   centre[c1] - centre[c2] = (sum_w we[w] * Sdiff[w, p, :]) @ node_tbl
    # Sdiff is static (indices/times/class counts only); we_weight is read
    # live from SMEM so the cluster term tracks parameter updates.
    wd = jnp.zeros((num_pairs, n_nodes), jnp.float32)
    l1 = jnp.float32(0.0)
    for w in range(num_we):
        we_w = we_ref[w, 0]                      # scalar read from SMEM
        wd = wd + we_w * sdiff_ref[w]            # (num_pairs, n_nodes)
        l1 = l1 + jnp.abs(we_w)                  # ||weEmbedding.weight||_1
    diffs = jnp.dot(wd, node_tbl, preferred_element_type=jnp.float32)  # (P, D)
    sq = jnp.sum(diffs * diffs, axis=1, keepdims=True)                 # (P, 1)
    # TODO(synk): add an epsilon inside sqrt if this is ever differentiated.
    los_d = 0.5 * jnp.sum(jnp.sqrt(sq))

    out_ref[0, 0] = loss - los_d + l1


def marine_forward(batch, node_emb, rela_emb, link_emb, we_weight, sdiff):
    """Everything (gathers + reductions + combine) runs inside one kernel."""
    vmem = pl.BlockSpec(memory_space=pltpu.MemorySpace.VMEM)
    smem = pl.BlockSpec(memory_space=pltpu.MemorySpace.SMEM)
    out = pl.pallas_call(
        marine_kernel,
        out_shape=jax.ShapeDtypeStruct((1, 1), jnp.float32),
        in_specs=[vmem, vmem, vmem, vmem, vmem, smem],
        out_specs=smem,
    )(batch, node_emb, rela_emb, link_emb, sdiff, we_weight)
    return out[0, 0]


def marine_reference(batch, node_emb, rela_emb, link_emb, we_weight,
                     class_counts, node_c, we_c, timesx_c):
    """Pure-JAX mirror of the PyTorch Marine.forward (for verification)."""
    idx_k = batch[:, 0]
    link_k = link_emb[idx_k]
    rela_k = rela_emb[idx_k]
    pos_i = node_emb[batch[:, 1]]
    pos_j = node_emb[batch[:, 2]]
    neg_i = node_emb[batch[:, 3]]
    neg_j = node_emb[batch[:, 4]]
    rela_err = jnp.sum((neg_j - neg_i - pos_j + pos_i) * rela_k, axis=1)
    link_err = jnp.sum((neg_i * neg_j - pos_i * pos_j) * link_k, axis=1)
    loss = jnp.sum(jax.nn.softplus(rela_err + link_err))

    centres = {}
    for c in class_counts:
        times = jnp.asarray(timesx_c[c], jnp.float32)[:, None]
        wex = we_weight[jnp.asarray(we_c[c])]
        nodex = node_emb[jnp.asarray(node_c[c])]
        cen = jnp.sum(times * wex * nodex, axis=0) / len(node_c[c])
        centres[c] = cen / class_counts[c]

    los_d = 0.0
    for c1 in class_counts:
        for c2 in class_counts:
            if c1 == c2:
                continue
            d = centres[c1] - centres[c2]
            los_d = los_d + 0.5 * jnp.sqrt(jnp.sum(d * d))

    l1 = jnp.sum(jnp.abs(we_weight))
    return loss - los_d + l1


if __name__ == "__main__":
    key = jax.random.PRNGKey(0)
    k_node, k_rela, k_link, k_batch_k, k_batch_n = jax.random.split(key, 5)

    # deterministic parameter init (shapes from Marine.__init__)
    node_emb = jax.random.normal(k_node, (NODE_COUNT, D), jnp.float32)
    rela_emb = jax.random.normal(k_rela, (RELA_COUNT, D), jnp.float32)
    link_emb = jax.random.normal(k_link, (RELA_COUNT, D), jnp.float32)
    we_weight = jnp.full((NUM_WE, 1), 0.5, jnp.float32)  # copy_ of [0.5]

    # synthetic Analyzer event statistics (normally parsed from eventFile)
    class_counts = {0: 10, 1: 14}                       # analyzer.classes
    node_c = {0: [1, 3, 5, 7, 9], 1: [2, 4, 6, 8, 10, 12, 14]}
    we_c = {0: [0, 1, 2, 0, 1], 1: [0, 1, 2, 0, 1, 2, 0]}
    timesx_c = {0: [3, 1, 4, 1, 5], 1: [2, 7, 1, 8, 2, 8, 1]}
    classes = sorted(class_counts)
    C = len(classes)

    # Static structure tensor (no parameters baked in):
    #   S[w, c, v] = scale_c * sum_{n: we_c[c][n]==w, node_c[c][n]==v} times
    # with scale_c = 1 / (len(node_c[c]) * classes[c]).
    S = np.zeros((NUM_WE, C, NODE_COUNT), np.float32)
    for ci, c in enumerate(classes):
        sc = 1.0 / (len(node_c[c]) * class_counts[c])
        for t, v, w in zip(timesx_c[c], node_c[c], we_c[c]):
            S[w, ci, v] += sc * float(t)
    # Ordered-pair difference structure: Sdiff[w, p, :] = S[w, c1, :] - S[w, c2, :]
    pairs = [(c1, c2) for c1 in range(C) for c2 in range(C) if c1 != c2]
    sdiff = np.stack([S[:, c1, :] - S[:, c2, :] for (c1, c2) in pairs], axis=1)
    sdiff = jnp.asarray(sdiff)                          # (NUM_WE, P, NODE_COUNT)

    # synthetic batchVector (B, 5): [k, i, j, neg_i, neg_j]
    col_k = jax.random.randint(k_batch_k, (B, 1), 0, RELA_COUNT, jnp.int32)
    col_n = jax.random.randint(k_batch_n, (B, 4), 0, NODE_COUNT, jnp.int32)
    batch = jnp.concatenate([col_k, col_n], axis=1)

    result = marine_forward(batch, node_emb, rela_emb, link_emb, we_weight,
                            sdiff)
    result = jax.block_until_ready(result)

    ref = jax.block_until_ready(
        marine_reference(batch, node_emb, rela_emb, link_emb, we_weight,
                         class_counts, node_c, we_c, timesx_c))

    np.testing.assert_allclose(np.asarray(result), np.asarray(ref),
                               rtol=1e-4, atol=1e-4)
    print("KERNEL_OK")
</pallas_src>

<mosaic_0001>
module attributes {stable_mosaic.version = 11 : i64} {
  func.func @marine_kernel(%arg0: memref<8x5xi32, #tpu.memory_space<vmem>>, %arg1: memref<32x128xf32, #tpu.memory_space<vmem>>, %arg2: memref<4x128xf32, #tpu.memory_space<vmem>>, %arg3: memref<4x128xf32, #tpu.memory_space<vmem>>, %arg4: memref<3x2x32xf32, #tpu.memory_space<vmem>>, %arg5: memref<3x1xf32, #tpu.memory_space<smem>>, %arg6: memref<1x1xf32, #tpu.memory_space<smem>>) attributes {dimension_semantics = [], scalar_prefetch = 0 : i64, scratch_operands = 0 : i64, tpu.core_type = #tpu.core_type<tc>} {
    %c0 = arith.constant 0 : index
    %c0_0 = arith.constant 0 : index
    %0 = vector.load %arg0[%c0, %c0_0] : memref<8x5xi32, #tpu.memory_space<vmem>>, vector<8x5xi32>
    %c0_1 = arith.constant 0 : index
    %c0_2 = arith.constant 0 : index
    %1 = vector.load %arg1[%c0_1, %c0_2] : memref<32x128xf32, #tpu.memory_space<vmem>>, vector<32x128xf32>
    %c0_3 = arith.constant 0 : index
    %c0_4 = arith.constant 0 : index
    %2 = vector.load %arg2[%c0_3, %c0_4] : memref<4x128xf32, #tpu.memory_space<vmem>>, vector<4x128xf32>
    %c0_5 = arith.constant 0 : index
    %c0_6 = arith.constant 0 : index
    %3 = vector.load %arg3[%c0_5, %c0_6] : memref<4x128xf32, #tpu.memory_space<vmem>>, vector<4x128xf32>
    %4 = tpu.iota {dimensions = array<i32: 1>} : vector<8x32xi32>
    %5 = vector.extract_strided_slice %0 {offsets = [0, 1], sizes = [8, 1], strides = [1, 1]} : vector<8x5xi32> to vector<8x1xi32>
    %6 = vector.broadcast %5 : vector<8x1xi32> to vector<8x32xi32>
    %7 = arith.cmpi eq, %4, %6 : vector<8x32xi32>
    %8 = arith.extui %7 : vector<8x32xi1> to vector<8x32xi32>
    %9 = arith.sitofp %8 : vector<8x32xi32> to vector<8x32xf32>
    %10 = vector.extract_strided_slice %0 {offsets = [0, 2], sizes = [8, 1], strides = [1, 1]} : vector<8x5xi32> to vector<8x1xi32>
    %11 = vector.broadcast %10 : vector<8x1xi32> to vector<8x32xi32>
    %12 = arith.cmpi eq, %4, %11 : vector<8x32xi32>
    %13 = arith.extui %12 : vector<8x32xi1> to vector<8x32xi32>
    %14 = arith.sitofp %13 : vector<8x32xi32> to vector<8x32xf32>
    %15 = vector.extract_strided_slice %0 {offsets = [0, 3], sizes = [8, 1], strides = [1, 1]} : vector<8x5xi32> to vector<8x1xi32>
    %16 = vector.broadcast %15 : vector<8x1xi32> to vector<8x32xi32>
    %17 = arith.cmpi eq, %4, %16 : vector<8x32xi32>
    %18 = arith.extui %17 : vector<8x32xi1> to vector<8x32xi32>
    %19 = arith.sitofp %18 : vector<8x32xi32> to vector<8x32xf32>
    %20 = vector.extract_strided_slice %0 {offsets = [0, 4], sizes = [8, 1], strides = [1, 1]} : vector<8x5xi32> to vector<8x1xi32>
    %21 = vector.broadcast %20 : vector<8x1xi32> to vector<8x32xi32>
    %22 = arith.cmpi eq, %4, %21 : vector<8x32xi32>
    %23 = arith.extui %22 : vector<8x32xi1> to vector<8x32xi32>
    %24 = arith.sitofp %23 : vector<8x32xi32> to vector<8x32xf32>
    %25 = tpu.concatenate %9, %14, %19, %24 in 0 : vector<8x32xf32>, vector<8x32xf32>, vector<8x32xf32>, vector<8x32xf32> -> vector<32x32xf32>
    %cst = arith.constant dense<0.000000e+00> : vector<32x128xf32>
    %26 = tpu.matmul %25, %1, %cst {dimension_numbers = #tpu.dot_dimension_numbers<[1], [0], [0], [1], [0, 0, 1, 1], [], []>} : vector<32x32xf32>, vector<32x128xf32>, vector<32x128xf32> -> vector<32x128xf32>
    %27 = vector.extract_strided_slice %26 {offsets = [0, 0], sizes = [8, 128], strides = [1, 1]} : vector<32x128xf32> to vector<8x128xf32>
    %28 = vector.extract_strided_slice %26 {offsets = [8, 0], sizes = [8, 128], strides = [1, 1]} : vector<32x128xf32> to vector<8x128xf32>
    %29 = vector.extract_strided_slice %26 {offsets = [16, 0], sizes = [8, 128], strides = [1, 1]} : vector<32x128xf32> to vector<8x128xf32>
    %30 = vector.extract_strided_slice %26 {offsets = [24, 0], sizes = [8, 128], strides = [1, 1]} : vector<32x128xf32> to vector<8x128xf32>
    %31 = tpu.iota {dimensions = array<i32: 1>} : vector<8x4xi32>
    %32 = vector.extract_strided_slice %0 {offsets = [0, 0], sizes = [8, 1], strides = [1, 1]} : vector<8x5xi32> to vector<8x1xi32>
    %33 = vector.broadcast %32 : vector<8x1xi32> to vector<8x4xi32>
    %34 = arith.cmpi eq, %31, %33 : vector<8x4xi32>
    %35 = arith.extui %34 : vector<8x4xi1> to vector<8x4xi32>
    %36 = arith.sitofp %35 : vector<8x4xi32> to vector<8x4xf32>
    %cst_7 = arith.constant dense<0.000000e+00> : vector<8x128xf32>
    %37 = tpu.matmul %36, %2, %cst_7 {dimension_numbers = #tpu.dot_dimension_numbers<[1], [0], [0], [1], [0, 0, 1, 1], [], []>} : vector<8x4xf32>, vector<4x128xf32>, vector<8x128xf32> -> vector<8x128xf32>
    %cst_8 = arith.constant dense<0.000000e+00> : vector<8x128xf32>
    %38 = tpu.matmul %36, %3, %cst_8 {dimension_numbers = #tpu.dot_dimension_numbers<[1], [0], [0], [1], [0, 0, 1, 1], [], []>} : vector<8x4xf32>, vector<4x128xf32>, vector<8x128xf32> -> vector<8x128xf32>
    %39 = arith.subf %30, %29 : vector<8x128xf32>
    %40 = arith.subf %39, %28 : vector<8x128xf32>
    %41 = arith.addf %40, %27 : vector<8x128xf32>
    %42 = arith.mulf %41, %37 : vector<8x128xf32>
    %43 = arith.mulf %29, %30 : vector<8x128xf32>
    %44 = arith.mulf %27, %28 : vector<8x128xf32>
    %45 = arith.subf %43, %44 : vector<8x128xf32>
    %46 = arith.mulf %45, %38 : vector<8x128xf32>
    %47 = arith.addf %42, %46 : vector<8x128xf32>
    %cst_9 = arith.constant dense<0.000000e+00> : vector<8xf32>
    %48 = vector.multi_reduction <add>, %47, %cst_9 [1] : vector<8x128xf32> to vector<8xf32>
    %49 = vector.shape_cast %48 : vector<8xf32> to vector<8x1xf32>
    %cst_10 = arith.constant 0.000000e+00 : f32
    %50 = vector.broadcast %cst_10 : f32 to vector<8x1xf32>
    %51 = arith.maximumf %49, %50 : vector<8x1xf32>
    %52 = math.absf %49 : vector<8x1xf32>
    %cst_11 = arith.constant 0.000000e+00 : f32
    %53 = vector.broadcast %cst_11 : f32 to vector<8x1xf32>
    %54 = arith.subf %53, %52 : vector<8x1xf32>
    %55 = math.exp %54 : vector<8x1xf32>
    %56 = math.log1p %55 : vector<8x1xf32>
    %57 = arith.addf %51, %56 : vector<8x1xf32>
    %58 = vector.shape_cast %57 : vector<8x1xf32> to vector<1x8x1xf32>
    %cst_12 = arith.constant dense<0.000000e+00> : vector<1xf32>
    %59 = vector.multi_reduction <add>, %58, %cst_12 [1, 2] : vector<1x8x1xf32> to vector<1xf32>
    %60 = vector.shape_cast %59 : vector<1xf32> to vector<1x1x1xf32>
    %61 = vector.extract %60[0, 0, 0] : f32 from vector<1x1x1xf32>
    %cst_13 = arith.constant 0.000000e+00 : f32
    %62 = vector.broadcast %cst_13 : f32 to vector<2x32xf32>
    %c0_14 = arith.constant 0 : index
    %c0_15 = arith.constant 0 : index
    %63 = memref.load %arg5[%c0_14, %c0_15] : memref<3x1xf32, #tpu.memory_space<smem>>
    %c0_16 = arith.constant 0 : index
    %c0_17 = arith.constant 0 : index
    %c0_18 = arith.constant 0 : index
    %64 = vector.load %arg4[%c0_16, %c0_17, %c0_18] : memref<3x2x32xf32, #tpu.memory_space<vmem>>, vector<1x2x32xf32>
    %65 = vector.shape_cast %64 : vector<1x2x32xf32> to vector<2x32xf32>
    %66 = vector.broadcast %63 : f32 to vector<2x32xf32>
    %67 = arith.mulf %66, %65 : vector<2x32xf32>
    %68 = arith.addf %62, %67 : vector<2x32xf32>
    %69 = math.absf %63 : f32
    %cst_19 = arith.constant 0.000000e+00 : f32
    %70 = arith.addf %cst_19, %69 : f32
    %c1 = arith.constant 1 : index
    %c0_20 = arith.constant 0 : index
    %71 = memref.load %arg5[%c1, %c0_20] : memref<3x1xf32, #tpu.memory_space<smem>>
    %c1_21 = arith.constant 1 : index
    %c0_22 = arith.constant 0 : index
    %c0_23 = arith.constant 0 : index
    %72 = vector.load %arg4[%c1_21, %c0_22, %c0_23] : memref<3x2x32xf32, #tpu.memory_space<vmem>>, vector<1x2x32xf32>
    %73 = vector.shape_cast %72 : vector<1x2x32xf32> to vector<2x32xf32>
    %74 = vector.broadcast %71 : f32 to vector<2x32xf32>
    %75 = arith.mulf %74, %73 : vector<2x32xf32>
    %76 = arith.addf %68, %75 : vector<2x32xf32>
    %77 = math.absf %71 : f32
    %78 = arith.addf %70, %77 : f32
    %c2 = arith.constant 2 : index
    %c0_24 = arith.constant 0 : index
    %79 = memref.load %arg5[%c2, %c0_24] : memref<3x1xf32, #tpu.memory_space<smem>>
    %c2_25 = arith.constant 2 : index
    %c0_26 = arith.constant 0 : index
    %c0_27 = arith.constant 0 : index
    %80 = vector.load %arg4[%c2_25, %c0_26, %c0_27] : memref<3x2x32xf32, #tpu.memory_space<vmem>>, vector<1x2x32xf32>
    %81 = vector.shape_cast %80 : vector<1x2x32xf32> to vector<2x32xf32>
    %82 = vector.broadcast %79 : f32 to vector<2x32xf32>
    %83 = arith.mulf %82, %81 : vector<2x32xf32>
    %84 = arith.addf %76, %83 : vector<2x32xf32>
    %85 = math.absf %79 : f32
    %86 = arith.addf %78, %85 : f32
    %cst_28 = arith.constant dense<0.000000e+00> : vector<2x128xf32>
    %87 = tpu.matmul %84, %1, %cst_28 {dimension_numbers = #tpu.dot_dimension_numbers<[1], [0], [0], [1], [0, 0, 1, 1], [], []>} : vector<2x32xf32>, vector<32x128xf32>, vector<2x128xf32> -> vector<2x128xf32>
    %88 = arith.mulf %87, %87 : vector<2x128xf32>
    %cst_29 = arith.constant dense<0.000000e+00> : vector<2xf32>
    %89 = vector.multi_reduction <add>, %88, %cst_29 [1] : vector<2x128xf32> to vector<2xf32>
    %90 = vector.shape_cast %89 : vector<2xf32> to vector<2x1xf32>
    %91 = math.sqrt %90 : vector<2x1xf32>
    %92 = vector.shape_cast %91 : vector<2x1xf32> to vector<1x2x1xf32>
    %cst_30 = arith.constant dense<0.000000e+00> : vector<1xf32>
    %93 = vector.multi_reduction <add>, %92, %cst_30 [1, 2] : vector<1x2x1xf32> to vector<1xf32>
    %94 = vector.shape_cast %93 : vector<1xf32> to vector<1x1x1xf32>
    %95 = vector.extract %94[0, 0, 0] : f32 from vector<1x1x1xf32>
    %cst_31 = arith.constant 5.000000e-01 : f32
    %96 = arith.mulf %cst_31, %95 : f32
    %97 = arith.subf %61, %96 : f32
    %98 = arith.addf %97, %86 : f32
    %c0_32 = arith.constant 0 : index
    %c0_33 = arith.constant 0 : index
    %99 = memref.load %arg6[%c0_32, %c0_33] : memref<1x1xf32, #tpu.memory_space<smem>>
    memref.store %98, %arg6[%c0_32, %c0_33] : memref<1x1xf32, #tpu.memory_space<smem>>
    return
  }
}

</mosaic_0001>

<llo_original>
// kernel: tpu_custom_call.1
$region0: #{tpu_custom_call.1}
  #allocation0 [shape = 'u32[]', space=smem, size = 0x4, offset = 0x4, fixed_abs, tag = 'smem constant byte address 0x4 - core index']
  #allocation1 [shape = 'u32[144,128]{1,0:T(1,128)}', space=vmem, size = 0x12000, scoped, tag = 'internal scratch']
  %s0 = inlined_call_operand.hbm [shape: s32[8,5], index: 0, kind: input, shape index: {}]
  %s1 = inlined_call_operand.hbm [shape: f32[32,128], index: 1, kind: input, shape index: {}]
  %s2 = inlined_call_operand.vmem [shape: f32[4,128], index: 2, kind: input, shape index: {}]
  %s3 = inlined_call_operand.vmem [shape: f32[4,128], index: 3, kind: input, shape index: {}]
  %s4 = inlined_call_operand.vmem [shape: f32[3,2,32], index: 4, kind: input, shape index: {}]
  %s5 = inlined_call_operand.vmem [shape: f32[3,1], index: 5, kind: input, shape index: {}]
  %s6 = inlined_call_operand.hbm [shape: f32[1,1], index: 6, kind: output, shape index: {}]
  %s7 = sld [smem:[#allocation0]]
  $region46: #{tpu_custom_call.1} parent=0
    _
  %s9 = ssub.s32 1, %s7
  %s10 = scalar_select 0, %s9, %s7
  $region1: #{tpu_custom_call.1} parent=0
    #allocation2 [shape = 'u8[4096]{0}', space=vmem, size = 0x1000, scoped, tag = 'input window, operand 0, single buffered']
    #allocation3 [shape = 's32[1]{0}', space=sflag, size = 0x4, scoped, tag = 'scoped memory for tpu_custom_call.1']
    #allocation4 [shape = 's32[1]{0}', space=sflag, size = 0x4, scoped, tag = 'scoped memory for tpu_custom_call.1']
    #allocation5 [shape = 's32[1]{0}', space=sflag, size = 0x4, scoped, tag = 'scoped memory for tpu_custom_call.1']
    #allocation6 [shape = 'u8[16384]{0}', space=vmem, size = 0x4000, scoped, tag = 'input window, operand 1, single buffered']
    #allocation7 [shape = 's32[1]{0}', space=sflag, size = 0x4, scoped, tag = 'scoped memory for tpu_custom_call.1']
    #allocation8 [shape = 'u8[2048]{0}', space=smem, size = 0x800, scoped, tag = 'input window, operand 5, single buffered']
    #allocation9 [shape = 'u8[512]{0}', space=smem, size = 0x200, scoped, tag = 'output window, operand 0, single buffered']
    %11 = vsyncpa [#allocation3], 0
    %12 = vsyncpa [#allocation7], 0
    %13 = vsyncpa [#allocation5], 0
    %14 = vsyncpa [#allocation4], 0
    // Predicated region
    $region2: #{tpu_custom_call.1} parent=1 // pred_check
      _
    $region3: #{tpu_custom_call.1} parent=1 // pred_check_branch
      %16 = sbr.rel (0) target = $region5
    $region4: #{tpu_custom_call.1} parent=1 // pred_region
      %s18 = ssub.s32 128, 128
      %19 = vsyncadd [#allocation3], %s18
      %s21 = sshll.u32 [#allocation2], 4
      %s22 = int_to_ptr.vmem [resolvable:$true] %s21
      %24 = dma.hbm_to_vmem [thread:$0]  %s0, 128, %s22, [#allocation3]
    $region5: #{tpu_custom_call.1} parent=1 // pred_fallthru
      _
    // Predicated region
    $region6: #{tpu_custom_call.1} parent=1 // pred_check
      _
    $region7: #{tpu_custom_call.1} parent=1 // pred_check_branch
      %26 = sbr.rel (0) target = $region9
    $region8: #{tpu_custom_call.1} parent=1 // pred_region
      %s28 = ssub.s32 512, 512
      %29 = vsyncadd [#allocation7], %s28
      %s30 = sshll.u32 [#allocation6], 4
      %s31 = int_to_ptr.vmem [resolvable:$true] %s30
      %36 = dma.hbm_to_vmem [thread:$0]  %s1, 512, %s31, [#allocation7], 128, 128, 8
    $region9: #{tpu_custom_call.1} parent=1 // pred_fallthru
      _
    // Predicated region
    $region10: #{tpu_custom_call.1} parent=1 // pred_check
      _
    $region11: #{tpu_custom_call.1} parent=1 // pred_check_branch
      %38 = sbr.rel (0) target = $region13
    $region12: #{tpu_custom_call.1} parent=1 // pred_region
      _
    $region13: #{tpu_custom_call.1} parent=1 // pred_fallthru
      _
    // Predicated region
    $region14: #{tpu_custom_call.1} parent=1 // pred_check
      _
    $region15: #{tpu_custom_call.1} parent=1 // pred_check_branch
      %40 = sbr.rel (0) target = $region17
    $region16: #{tpu_custom_call.1} parent=1 // pred_region
      _
    $region17: #{tpu_custom_call.1} parent=1 // pred_fallthru
      _
    // Predicated region
    $region18: #{tpu_custom_call.1} parent=1 // pred_check
      _
    $region19: #{tpu_custom_call.1} parent=1 // pred_check_branch
      %42 = sbr.rel (0) target = $region21
    $region20: #{tpu_custom_call.1} parent=1 // pred_region
      _
    $region21: #{tpu_custom_call.1} parent=1 // pred_fallthru
      _
    // Predicated region
    $region22: #{tpu_custom_call.1} parent=1 // pred_check
      _
    $region23: #{tpu_custom_call.1} parent=1 // pred_check_branch
      %44 = sbr.rel (0) target = $region25
    $region24: #{tpu_custom_call.1} parent=1 // pred_region
      %s46 = ssub.s32 64, 64
      %47 = vsyncadd [#allocation5], %s46
      %s49 = sshll.u32 %s5, 4
      %s50 = int_to_ptr.vmem [resolvable:$true] %s49
      %52 = dma.vmem_to_smem %s50, 64, [#allocation8], [#allocation5]
    $region25: #{tpu_custom_call.1} parent=1 // pred_fallthru
      _
    // Predicated region
    $region26: #{tpu_custom_call.1} parent=1 // pred_check
      _
    $region27: #{tpu_custom_call.1} parent=1 // pred_check_branch
      %54 = sbr.rel (0) target = $region29
    $region28: #{tpu_custom_call.1} parent=1 // pred_region
      %55 = dma.done [#allocation3], 128
    $region29: #{tpu_custom_call.1} parent=1 // pred_fallthru
      _
    // Predicated region
    $region30: #{tpu_custom_call.1} parent=1 // pred_check
      _
    $region31: #{tpu_custom_call.1} parent=1 // pred_check_branch
      %57 = sbr.rel (0) target = $region33
    $region32: #{tpu_custom_call.1} parent=1 // pred_region
      %58 = dma.done [#allocation7], 512
    $region33: #{tpu_custom_call.1} parent=1 // pred_fallthru
      _
    // Predicated region
    $region34: #{tpu_custom_call.1} parent=1 // pred_check
      _
    $region35: #{tpu_custom_call.1} parent=1 // pred_check_branch
      %60 = sbr.rel (0) target = $region37
    $region36: #{tpu_custom_call.1} parent=1 // pred_region
      %61 = dma.done [#allocation5], 64
    $region37: #{tpu_custom_call.1} parent=1 // pred_fallthru
      _
    %62 = sfence
    %v63 = vld [vmem:[#allocation2] sm:$0xff]
    %v64 = vld [vmem:[#allocation6] sm:$0xff]
    %v65 = vld [vmem:[#allocation6 + $0x8] sm:$0xff]
    %v66 = vld [vmem:[#allocation6 + $0x10] sm:$0xff]
    %v67 = vld [vmem:[#allocation6 + $0x18] sm:$0xff]
    %v68 = vld [vmem:[%s2] sm:$0xf]
    %v69 = vld [vmem:[%s3] sm:$0xf]
    %v70 = vlaneseq
    %v71 = vand.u32 %v70, 127
    %72 = vset.pattern.permute.xlu0 1
    %73 = vperm.xlu0 %72, %v63
    %v74 = vpop.permute.xlu0 %73
    %vm75 = vcmp.eq.s32.totalorder %v71, %v74
    %v76 = vsel %vm75, 1, 0
    %v77 = vcvt.s32.f32 %v76
    %78 = vset.pattern.permute.xlu0 2
    %79 = vperm.xlu0 %78, %v63
    %v80 = vpop.permute.xlu0 %79
    %vm81 = vcmp.eq.s32.totalorder %v71, %v80
    %v82 = vsel %vm81, 1, 0
    %v83 = vcvt.s32.f32 %v82
    %84 = vset.pattern.permute.xlu0 3
    %85 = vperm.xlu0 %84, %v63
    %v86 = vpop.permute.xlu0 %85
    %vm87 = vcmp.eq.s32.totalorder %v71, %v86
    %v88 = vsel %vm87, 1, 0
    %v89 = vcvt.s32.f32 %v88
    %90 = vset.pattern.permute.xlu0 4
    %91 = vperm.xlu0 %90, %v63
    %v92 = vpop.permute.xlu0 %91
    %vm93 = vcmp.eq.s32.totalorder %v71, %v92
    %v94 = vsel %vm93, 1, 0
    %v95 = vcvt.s32.f32 %v94
    %vm96 = vcmask 261120
    %v98 = vsel %vm96, %v77, 0
    %v101 = vsel %vm96, %v83, 0
    %v104 = vsel %vm96, %v89, 0
    %v107 = vsel %vm96, %v95, 0
    %109 = vmatprep.subr.mxu0 0.0
    %110 = vmatpush1.msra.mxu0 %v64
    %111 = vmatprep.subr.mxu0 0.0
    %112 = vmatpush1.msra.mxu0 %v65
    %113 = vmatprep.subr.mxu0 0.0
    %114 = vmatpush1.msra.mxu0 %v66
    %115 = vmatprep.subr.mxu0 0.0
    %116 = vmatpush1.msra.mxu0 %v67
    %117 = vmatprep.subr.mxu0 0.0
    %118 = vmatpush1.msra.mxu0 0.0
    %119 = vmatprep.subr.mxu0 0.0
    %120 = vmatpush1.msra.mxu0 0.0
    %121 = vmatprep.subr.mxu0 0.0
    %122 = vmatpush1.msra.mxu0 0.0
    %123 = vmatprep.subr.mxu0 0.0
    %124 = vmatpush1.msra.mxu0 0.0
    %125 = vmatprep.subr.mxu0 0.0
    %126 = vmatpush1.msra.mxu0 0.0
    %127 = vmatprep.subr.mxu0 0.0
    %128 = vmatpush1.msra.mxu0 0.0
    %129 = vmatprep.subr.mxu0 0.0
    %130 = vmatpush1.msra.mxu0 0.0
    %131 = vmatprep.subr.mxu0 0.0
    %132 = vmatpush1.msra.mxu0 0.0
    %133 = vmatprep.subr.mxu0 0.0
    %134 = vmatpush1.msra.mxu0 0.0
    %135 = vmatprep.subr.mxu0 0.0
    %136 = vmatpush1.msra.mxu0 0.0
    %137 = vmatprep.subr.mxu0 0.0
    %138 = vmatpush1.msra.mxu0 0.0
    %139 = vmatprep.subr.mxu0 0.0
    %140 = vmatpush1.msra.mxu0 0.0
    %141 = vmatprep.subr.mxu0 0.0
    %142 = vmatpush1.msra.mxu0 0.0
    %143 = vmatprep.subr.mxu0 0.0
    %144 = vmatpush1.msra.mxu0 0.0
    %145 = vmatprep.subr.mxu0 0.0
    %146 = vmatpush1.msra.mxu0 0.0
    %147 = vmatprep.subr.mxu0 0.0
    %148 = vmatpush1.msra.mxu0 0.0
    %149 = vmatprep.subr.mxu0 0.0
    %150 = vmatpush1.msra.mxu0 0.0
    %151 = vmatprep.subr.mxu0 0.0
    %152 = vmatpush1.msra.mxu0 0.0
    %153 = vmatprep.subr.mxu0 0.0
    %154 = vmatpush1.msra.mxu0 0.0
    %155 = vmatprep.subr.mxu0 0.0
    %156 = vmatpush1.msra.mxu0 0.0
    %157 = vmatprep.subr.mxu0 0.0
    %158 = vmatpush1.msra.mxu0 0.0
    %159 = vmatprep.subr.mxu0 0.0
    %160 = vmatpush1.msra.mxu0 0.0
    %161 = vmatprep.subr.mxu0 0.0
    %162 = vmatpush1.msra.mxu0 0.0
    %163 = vmatprep.subr.mxu0 0.0
    %164 = vmatpush1.msra.mxu0 0.0
    %165 = vmatprep.subr.mxu0 0.0
    %166 = vmatpush1.msra.mxu0 0.0
    %167 = vmatprep.subr.mxu0 0.0
    %168 = vmatpush1.msra.mxu0 0.0
    %169 = vmatprep.subr.mxu0 0.0
    %170 = vmatpush1.msra.mxu0 0.0
    %171 = vmatprep.subr.mxu0 0.0
    %172 = vmatpush1.msra.mxu0 0.0
    %173 = vmatprep.mubr.f32.mxu0 0.0
    %174 = vmatmul.mubr.f32.gmra.mrb[0].mxu0 %v98
    %v175 = vpop.f32.mrb[0].mxu0
    %v176 = vadd.f32 0.0, %v175
    %v177 = vpop.f32.mrb[0].mxu0
    %178 = vmatprep.mubr.f32.mxu0 0.0
    %179 = vmatmul.mubr.f32.gmra.mrb[0].mxu0 %v101
    %v180 = vpop.f32.mrb[0].mxu0
    %v181 = vadd.f32 0.0, %v180
    %v182 = vpop.f32.mrb[0].mxu0
    %183 = vmatprep.mubr.f32.mxu0 0.0
    %184 = vmatmul.mubr.f32.gmra.mrb[0].mxu0 %v104
    %v185 = vpop.f32.mrb[0].mxu0
    %v186 = vadd.f32 0.0, %v185
    %v187 = vpop.f32.mrb[0].mxu0
    %188 = vmatprep.mubr.f32.mxu0 0.0
    %189 = vmatmul.mubr.f32.gmra.mrb[0].mxu0 %v107
    %v190 = vpop.f32.mrb[0].mxu0
    %v191 = vadd.f32 0.0, %v190
    %v192 = vpop.f32.mrb[0].mxu0
    %193 = vdwg.mxu0
    %194 = vset.pattern.permute.xlu0 0
    %195 = vperm.xlu0 %194, %v63
    %v196 = vpop.permute.xlu0 %195
    %vm197 = vcmp.eq.s32.totalorder %v71, %v196
    %v198 = vsel %vm197, 1, 0
    %v199 = vcvt.s32.f32 %v198
    %vm200 = vcmask 31744
    %v202 = vsel %vm200, %v199, 0
    %vm204 = vcmask 1043456
    %v206 = vsel %vm204, %v68, 0
    %208 = vmatprep.subr.mxu0 0.0
    %209 = vmatpush1.msra.mxu0 %v206
    %210 = vmatprep.subr.mxu0 0.0
    %211 = vmatpush1.msra.mxu0 0.0
    %212 = vmatprep.subr.mxu0 0.0
    %213 = vmatpush1.msra.mxu0 0.0
    %214 = vmatprep.subr.mxu0 0.0
    %215 = vmatpush1.msra.mxu0 0.0
    %216 = vmatprep.subr.mxu0 0.0
    %217 = vmatpush1.msra.mxu0 0.0
    %218 = vmatprep.subr.mxu0 0.0
    %219 = vmatpush1.msra.mxu0 0.0
    %220 = vmatprep.subr.mxu0 0.0
    %221 = vmatpush1.msra.mxu0 0.0
    %222 = vmatprep.subr.mxu0 0.0
    %223 = vmatpush1.msra.mxu0 0.0
    %224 = vmatprep.subr.mxu0 0.0
    %225 = vmatpush1.msra.mxu0 0.0
    %226 = vmatprep.subr.mxu0 0.0
    %227 = vmatpush1.msra.mxu0 0.0
    %228 = vmatprep.subr.mxu0 0.0
    %229 = vmatpush1.msra.mxu0 0.0
    %230 = vmatprep.subr.mxu0 0.0
    %231 = vmatpush1.msra.mxu0 0.0
    %232 = vmatprep.subr.mxu0 0.0
    %233 = vmatpush1.msra.mxu0 0.0
    %234 = vmatprep.subr.mxu0 0.0
    %235 = vmatpush1.msra.mxu0 0.0
    %236 = vmatprep.subr.mxu0 0.0
    %237 = vmatpush1.msra.mxu0 0.0
    %238 = vmatprep.subr.mxu0 0.0
    %239 = vmatpush1.msra.mxu0 0.0
    %240 = vmatprep.subr.mxu0 0.0
    %241 = vmatpush1.msra.mxu0 0.0
    %242 = vmatprep.subr.mxu0 0.0
    %243 = vmatpush1.msra.mxu0 0.0
    %244 = vmatprep.subr.mxu0 0.0
    %245 = vmatpush1.msra.mxu0 0.0
    %246 = vmatprep.subr.mxu0 0.0
    %247 = vmatpush1.msra.mxu0 0.0
    %248 = vmatprep.subr.mxu0 0.0
    %249 = vmatpush1.msra.mxu0 0.0
    %250 = vmatprep.subr.mxu0 0.0
    %251 = vmatpush1.msra.mxu0 0.0
    %252 = vmatprep.subr.mxu0 0.0
    %253 = vmatpush1.msra.mxu0 0.0
    %254 = vmatprep.subr.mxu0 0.0
    %255 = vmatpush1.msra.mxu0 0.0
    %256 = vmatprep.subr.mxu0 0.0
    %257 = vmatpush1.msra.mxu0 0.0
    %258 = vmatprep.subr.mxu0 0.0
    %259 = vmatpush1.msra.mxu0 0.0
    %260 = vmatprep.subr.mxu0 0.0
    %261 = vmatpush1.msra.mxu0 0.0
    %262 = vmatprep.subr.mxu0 0.0
    %263 = vmatpush1.msra.mxu0 0.0
    %264 = vmatprep.subr.mxu0 0.0
    %265 = vmatpush1.msra.mxu0 0.0
    %266 = vmatprep.subr.mxu0 0.0
    %267 = vmatpush1.msra.mxu0 0.0
    %268 = vmatprep.subr.mxu0 0.0
    %269 = vmatpush1.msra.mxu0 0.0
    %270 = vmatprep.subr.mxu0 0.0
    %271 = vmatpush1.msra.mxu0 0.0
    %272 = vmatprep.mubr.f32.mxu0 0.0
    %273 = vmatmul.mubr.f32.gmra.mrb[0].mxu0 %v202
    %v274 = vpop.f32.mrb[0].mxu0
    %v275 = vadd.f32 0.0, %v274
    %v276 = vpop.f32.mrb[0].mxu0
    %277 = vdwg.mxu0
    %v279 = vsel %vm204, %v69, 0
    %281 = vmatprep.subr.mxu0 0.0
    %282 = vmatpush1.msra.mxu0 %v279
    %283 = vmatprep.subr.mxu0 0.0
    %284 = vmatpush1.msra.mxu0 0.0
    %285 = vmatprep.subr.mxu0 0.0
    %286 = vmatpush1.msra.mxu0 0.0
    %287 = vmatprep.subr.mxu0 0.0
    %288 = vmatpush1.msra.mxu0 0.0
    %289 = vmatprep.subr.mxu0 0.0
    %290 = vmatpush1.msra.mxu0 0.0
    %291 = vmatprep.subr.mxu0 0.0
    %292 = vmatpush1.msra.mxu0 0.0
    %293 = vmatprep.subr.mxu0 0.0
    %294 = vmatpush1.msra.mxu0 0.0
    %295 = vmatprep.subr.mxu0 0.0
    %296 = vmatpush1.msra.mxu0 0.0
    %297 = vmatprep.subr.mxu0 0.0
    %298 = vmatpush1.msra.mxu0 0.0
    %299 = vmatprep.subr.mxu0 0.0
    %300 = vmatpush1.msra.mxu0 0.0
    %301 = vmatprep.subr.mxu0 0.0
    %302 = vmatpush1.msra.mxu0 0.0
    %303 = vmatprep.subr.mxu0 0.0
    %304 = vmatpush1.msra.mxu0 0.0
    %305 = vmatprep.subr.mxu0 0.0
    %306 = vmatpush1.msra.mxu0 0.0
    %307 = vmatprep.subr.mxu0 0.0
    %308 = vmatpush1.msra.mxu0 0.0
    %309 = vmatprep.subr.mxu0 0.0
    %310 = vmatpush1.msra.mxu0 0.0
    %311 = vmatprep.subr.mxu0 0.0
    %312 = vmatpush1.msra.mxu0 0.0
    %313 = vmatprep.subr.mxu0 0.0
    %314 = vmatpush1.msra.mxu0 0.0
    %315 = vmatprep.subr.mxu0 0.0
    %316 = vmatpush1.msra.mxu0 0.0
    %317 = vmatprep.subr.mxu0 0.0
    %318 = vmatpush1.msra.mxu0 0.0
    %319 = vmatprep.subr.mxu0 0.0
    %320 = vmatpush1.msra.mxu0 0.0
    %321 = vmatprep.subr.mxu0 0.0
    %322 = vmatpush1.msra.mxu0 0.0
    %323 = vmatprep.subr.mxu0 0.0
    %324 = vmatpush1.msra.mxu0 0.0
    %325 = vmatprep.subr.mxu0 0.0
    %326 = vmatpush1.msra.mxu0 0.0
    %327 = vmatprep.subr.mxu0 0.0
    %328 = vmatpush1.msra.mxu0 0.0
    %329 = vmatprep.subr.mxu0 0.0
    %330 = vmatpush1.msra.mxu0 0.0
    %331 = vmatprep.subr.mxu0 0.0
    %332 = vmatpush1.msra.mxu0 0.0
    %333 = vmatprep.subr.mxu0 0.0
    %334 = vmatpush1.msra.mxu0 0.0
    %335 = vmatprep.subr.mxu0 0.0
    %336 = vmatpush1.msra.mxu0 0.0
    %337 = vmatprep.subr.mxu0 0.0
    %338 = vmatpush1.msra.mxu0 0.0
    %339 = vmatprep.subr.mxu0 0.0
    %340 = vmatpush1.msra.mxu0 0.0
    %341 = vmatprep.subr.mxu0 0.0
    %342 = vmatpush1.msra.mxu0 0.0
    %343 = vmatprep.subr.mxu0 0.0
    %344 = vmatpush1.msra.mxu0 0.0
    %345 = vmatprep.mubr.f32.mxu0 0.0
    %346 = vmatmul.mubr.f32.gmra.mrb[0].mxu0 %v202
    %v347 = vpop.f32.mrb[0].mxu0
    %v348 = vadd.f32 0.0, %v347
    %v349 = vpop.f32.mrb[0].mxu0
    %350 = vdwg.mxu0
    %v351 = vsub.f32 %v191, %v186
    %v352 = vsub.f32 %v351, %v181
    %v353 = vadd.f32 %v352, %v176
    %v354 = vmul.f32 %v353, %v275
    %v355 = vmul.f32 %v186, %v191
    %v356 = vmul.f32 %v176, %v181
    %v357 = vsub.f32 %v355, %v356
    %v358 = vmul.f32 %v357, %v348
    %v359 = vadd.f32 %v354, %v358
    %360 = vadd.xlane.f32.xlu0 %v359
    %v361 = vpop.xlane.xlu0 %360
    %v362 = vmax.f32 %v361, 0.0
    %v363 = vand.u32 2147483647, %v361
    %v364 = vsub.f32 0.0, %v363
    %v365 = vmul.f32 %v364, 1.442695
    %v366 = vpow.pop %v365
    %v367 = vadd.f32 %v366, 1.0
    %v368 = vlog2.pop %v367
    %v369 = vmul.f32 %v368, 0.6931472
    %v370 = vmul.f32 -0.5, %v366
    %v371 = vadd.f32 %v370, 1.0
    %v372 = vmul.f32 %v371, %v366
    %v373 = vand.u32 2147483647, %v366
    %vm374 = vcmp.lt.f32.partialorder %v373, 0.0004427343
    %v375 = vsel %vm374, %v372, %v369
    %v376 = vadd.f32 %v362, %v375
    %vm377 = vcmask 7168
    %v378 = vsel %vm377, %v376, 0.0
    %379 = vadd.xlane.f32.xlu0 %v378
    %v380 = vpop.xlane.xlu0 %379
    %v381 = vrot.slane %v380, 4
    %v382 = vadd.f32 %v380, %v381
    %v383 = vrot.slane %v382, 2
    %v384 = vadd.f32 %v382, %v383
    %v385 = vrot.slane %v384, 1
    %v386 = vadd.f32 %v384, %v385
    %s387 = vtos %v386
    %s388 = sld [smem:[#allocation8]]
    %v389 = vld [vmem:[%s4] sm:$0x3]
    %v390 = vstv %s388
    %v391 = vmul.f32 %v390, %v389
    %v392 = vadd.f32 %v391, 0.0
    %s393 = sand.u32 2147483647, %s388
    %s394 = sadd.f32 %s393, 0.0
    %s395 = sld [smem:[#allocation8 + $0x80]]
    %s396 = scalar_lea.vmem %s4, 2
    %v397 = vld [vmem:[%s396] sm:$0x3]
    %v398 = vstv %s395
    %v399 = vmul.f32 %v398, %v397
    %v400 = vadd.f32 %v392, %v399
    %s401 = sand.u32 2147483647, %s395
    %s402 = sadd.f32 %s394, %s401
    %s403 = sld [smem:[#allocation8 + $0x100]]
    %s404 = scalar_lea.vmem %s4, 4
    %v405 = vld [vmem:[%s404] sm:$0x3]
    %v406 = vstv %s403
    %v407 = vmul.f32 %v406, %v405
    %v408 = vadd.f32 %v400, %v407
    %s409 = sand.u32 2147483647, %s403
    %s410 = sadd.f32 %s402, %s409
    %v412 = vsel %vm96, %v408, 0
    %414 = vmatprep.subr.mxu0 0.0
    %415 = vmatpush1.msra.mxu0 %v64
    %416 = vmatprep.subr.mxu0 0.0
    %417 = vmatpush1.msra.mxu0 %v65
    %418 = vmatprep.subr.mxu0 0.0
    %419 = vmatpush1.msra.mxu0 %v66
    %420 = vmatprep.subr.mxu0 0.0
    %421 = vmatpush1.msra.mxu0 %v67
    %422 = vmatprep.subr.mxu0 0.0
    %423 = vmatpush1.msra.mxu0 0.0
    %424 = vmatprep.subr.mxu0 0.0
    %425 = vmatpush1.msra.mxu0 0.0
    %426 = vmatprep.subr.mxu0 0.0
    %427 = vmatpush1.msra.mxu0 0.0
    %428 = vmatprep.subr.mxu0 0.0
    %429 = vmatpush1.msra.mxu0 0.0
    %430 = vmatprep.subr.mxu0 0.0
    %431 = vmatpush1.msra.mxu0 0.0
    %432 = vmatprep.subr.mxu0 0.0
    %433 = vmatpush1.msra.mxu0 0.0
    %434 = vmatprep.subr.mxu0 0.0
    %435 = vmatpush1.msra.mxu0 0.0
    %436 = vmatprep.subr.mxu0 0.0
    %437 = vmatpush1.msra.mxu0 0.0
    %438 = vmatprep.subr.mxu0 0.0
    %439 = vmatpush1.msra.mxu0 0.0
    %440 = vmatprep.subr.mxu0 0.0
    %441 = vmatpush1.msra.mxu0 0.0
    %442 = vmatprep.subr.mxu0 0.0
    %443 = vmatpush1.msra.mxu0 0.0
    %444 = vmatprep.subr.mxu0 0.0
    %445 = vmatpush1.msra.mxu0 0.0
    %446 = vmatprep.subr.mxu0 0.0
    %447 = vmatpush1.msra.mxu0 0.0
    %448 = vmatprep.subr.mxu0 0.0
    %449 = vmatpush1.msra.mxu0 0.0
    %450 = vmatprep.subr.mxu0 0.0
    %451 = vmatpush1.msra.mxu0 0.0
    %452 = vmatprep.subr.mxu0 0.0
    %453 = vmatpush1.msra.mxu0 0.0
    %454 = vmatprep.subr.mxu0 0.0
    %455 = vmatpush1.msra.mxu0 0.0
    %456 = vmatprep.subr.mxu0 0.0
    %457 = vmatpush1.msra.mxu0 0.0
    %458 = vmatprep.subr.mxu0 0.0
    %459 = vmatpush1.msra.mxu0 0.0
    %460 = vmatprep.subr.mxu0 0.0
    %461 = vmatpush1.msra.mxu0 0.0
    %462 = vmatprep.subr.mxu0 0.0
    %463 = vmatpush1.msra.mxu0 0.0
    %464 = vmatprep.subr.mxu0 0.0
    %465 = vmatpush1.msra.mxu0 0.0
    %466 = vmatprep.subr.mxu0 0.0
    %467 = vmatpush1.msra.mxu0 0.0
    %468 = vmatprep.subr.mxu0 0.0
    %469 = vmatpush1.msra.mxu0 0.0
    %470 = vmatprep.subr.mxu0 0.0
    %471 = vmatpush1.msra.mxu0 0.0
    %472 = vmatprep.subr.mxu0 0.0
    %473 = vmatpush1.msra.mxu0 0.0
    %474 = vmatprep.subr.mxu0 0.0
    %475 = vmatpush1.msra.mxu0 0.0
    %476 = vmatprep.subr.mxu0 0.0
    %477 = vmatpush1.msra.mxu0 0.0
    %478 = vmatprep.mubr.f32.mxu0 0.0
    %479 = vmatmul.mubr.f32.gmra.mrb[0].mxu0 %v412
    %v480 = vpop.f32.mrb[0].mxu0
    %v481 = vadd.f32 0.0, %v480
    %v482 = vpop.f32.mrb[0].mxu0
    %483 = vdwg.mxu0
    %v484 = vmul.f32 %v481, %v481
    %vm485 = vcmask 1041408
    %v486 = vsel %vm485, %v484, 0.0
    %487 = vadd.xlane.f32.xlu0 %v486
    %v488 = vpop.xlane.xlu0 %487
    %v489 = vrsqrt.pop %v488
    %v490 = vmul.f32 %v488, %v489
    %vm491 = vcmp.eq.f32.partialorder %v488, inf
    %v492 = vsel %vm491, %v488, %v490
    %vm493 = vcmp.eq.f32.partialorder %v488, 0.0
    %v494 = vand.u32 %v488, 2147483648
    %v495 = vsel %vm493, %v494, %v492
    %vm496 = vcmask 1024
    %v497 = vsel %vm496, %v495, 0.0
    %498 = vadd.xlane.f32.xlu0 %v497
    %v499 = vpop.xlane.xlu0 %498
    %v500 = vrot.slane %v499, 4
    %v501 = vadd.f32 %v499, %v500
    %v502 = vrot.slane %v501, 2
    %v503 = vadd.f32 %v501, %v502
    %v504 = vrot.slane %v503, 1
    %v505 = vadd.f32 %v503, %v504
    %s506 = vtos %v505
    %s507 = smul.f32 %s506, 0.5
    %s508 = ssub.f32 %s387, %s507
    %s509 = sadd.f32 %s508, %s410
    %s510 = scalar_lea.smem [#allocation9], 0
    %511 = sst [smem:[%s510]] %s509
    // Predicated region
    $region38: #{tpu_custom_call.1} parent=1 // pred_check
      _
    $region39: #{tpu_custom_call.1} parent=1 // pred_check_branch
      %513 = sbr.rel (0) target = $region41
    $region40: #{tpu_custom_call.1} parent=1 // pred_region
      %s515 = ssub.s32 16, 16
      %516 = vsyncadd [#allocation4], %s515
      %519 = dma.smem_to_hbm [#allocation9], 16, %s6, [#allocation4]
    $region41: #{tpu_custom_call.1} parent=1 // pred_fallthru
      _
    // Predicated region
    $region42: #{tpu_custom_call.1} parent=1 // pred_check
      _
    $region43: #{tpu_custom_call.1} parent=1 // pred_check_branch
      %521 = sbr.rel (0) target = $region45
    $region44: #{tpu_custom_call.1} parent=1 // pred_region
      %522 = dma.done [#allocation4], 16
    $region45: #{tpu_custom_call.1} parent=1 // pred_fallthru
      _
    %523 = sfence
    %524 = vsyncpa [#allocation3], 1
    %525 = vsyncpa [#allocation7], 1
    %526 = vsyncpa [#allocation4], 1
    %527 = vsyncpa [#allocation5], 1

</llo_original>
